<compile_context>
chip_gen: v6e
topology: v6e:2x2x1
jax: 0.10.0
libtpu: 0.0.40
codegen_flags: <defaults>
</compile_context>

<pallas_src>
import functools

import jax
import jax.numpy as jnp
from jax.experimental import pallas as pl
from jax.experimental.pallas import tpu as pltpu


def _disc_shared_kernel(hpl_ref, hmi_ref, vmat_ref, b_ref, out_ref):
    """Shared summary vector: scores are a single MXU matmul per stream.

    hpl_ref, hmi_ref : (TM, P)  VMEM   packed node embeddings (P = r * n_h)
    vmat_ref         : (P, r)   VMEM   block-diagonal copies of v = c @ W.T
    b_ref            : (1, 1)   SMEM   bilinear bias
    out_ref          : (TM, 2r) VMEM   [sc1_0..sc1_{r-1}, sc2_0..sc2_{r-1}]
    """
    vmat = vmat_ref[...]
    bias = b_ref[0, 0]
    sc1 = jnp.dot(hpl_ref[...], vmat, preferred_element_type=jnp.float32)   # (TM, r)
    sc2 = jnp.dot(hmi_ref[...], vmat, preferred_element_type=jnp.float32)   # (TM, r)
    out_ref[...] = (jnp.concatenate([sc1, sc2], axis=-1) + bias).astype(out_ref.dtype)


def _disc_perrow_kernel(hpl_ref, hmi_ref, c_ref, wbig_ref, sseg_ref, b_ref, out_ref):
    """Per-row summary: fuse v = c @ W.T on the (otherwise idle) MXU.

    c_ref    : (TM, P) VMEM  streamed summary rows (native dtype)
    wbig_ref : (P, P)  VMEM  resident block-diagonal of W.T
    sseg_ref : (P, r)  VMEM  segment-sum selector (1 where lane belongs to row j)
    """
    bias = b_ref[0, 0]
    v = jnp.dot(c_ref[...].astype(jnp.float32), wbig_ref[...],
                preferred_element_type=jnp.float32)                         # (TM, P)
    sseg = sseg_ref[...]
    sc1 = jnp.dot(hpl_ref[...].astype(jnp.float32) * v, sseg,
                  preferred_element_type=jnp.float32)                       # (TM, r)
    sc2 = jnp.dot(hmi_ref[...].astype(jnp.float32) * v, sseg,
                  preferred_element_type=jnp.float32)
    out_ref[...] = (jnp.concatenate([sc1, sc2], axis=-1) + bias).astype(out_ref.dtype)


def _round_down(x, m):
    return (x // m) * m


@functools.partial(jax.jit, static_argnames=("tile_bytes",))
def discriminator_forward(c, h_pl, h_mi, weight, bias,
                          s_bias1=None, s_bias2=None, *, tile_bytes=4 << 20):
    """JAX wrapper reproducing Discriminator.forward.

    c      : (1, n_h), (n_h,) or (N, n_h)  summary vector(s)
    h_pl   : (N, n_h)  positive node embeddings
    h_mi   : (N, n_h)  negative (corrupted) node embeddings
    weight : (n_h, n_h)  nn.Bilinear(n_h, n_h, 1).weight[0]
    bias   : scalar      nn.Bilinear bias
    returns logits : (N, 2)
    """
    N, n_h = h_pl.shape
    c2 = jnp.asarray(c).reshape(-1, n_h)
    assert c2.shape[0] in (1, N), "c must broadcast over the node dimension"
    per_row = c2.shape[0] != 1

    # Lane packing: fold r rows into one 128-lane row when n_h is a small
    # divisor of 128 (free contiguous reshape).  No-op when n_h >= 128.
    r = 128 // n_h if (n_h < 128 and 128 % n_h == 0) else 1
    if N % r != 0:
        r = 1                      # TODO(synk): could pad a handful of rows instead
    P = r * n_h
    Np = N // r

    dtype_h = h_pl.dtype
    item_h = jnp.dtype(dtype_h).itemsize
    eye_r = jnp.eye(r, dtype=jnp.float32)

    # --- generation-aware VMEM budget (v7x 64 MiB, v5e/v6e 128 MiB physical) --
    try:
        vmem_cap = int(pltpu.get_tpu_info().vmem_capacity_bytes)
    except Exception:
        vmem_cap = 64 << 20                       # conservative fallback
    budget = (vmem_cap * 7) // 10                 # headroom for compiler scratch

    if per_row:
        item_c = jnp.dtype(c2.dtype).itemsize
        stream_row_bytes = 2 * P * item_h + P * item_c
        resident_bytes = P * P * 4 + P * r * 4    # Wbig + sseg
        # TODO(synk): for very large n_h (Wbig > VMEM budget) stream W over
        # k-blocks instead of keeping it resident.
    else:
        stream_row_bytes = 2 * P * item_h
        resident_bytes = P * r * item_h           # Vmat
    out_row_bytes = 2 * r * 4

    # --- row-tile sizing: bytes-driven, then VMEM / megacore / extent caps ---
    tm = max(128, _round_down(int(tile_bytes) // max(P * item_h, 1), 128))
    avail = max(budget - resident_bytes, 2 * 8 * (stream_row_bytes + out_row_bytes))
    tm_cap = max(8, _round_down(avail // (2 * (stream_row_bytes + out_row_bytes)), 8))
    tm = min(tm, tm_cap)
    if Np > 256:                                  # give megacore >= 2 tiles (v7x)
        tm = min(tm, ((pl.cdiv(Np, 2) + 127) // 128) * 128)
    tm = min(tm, _round_down(Np, 8)) if Np >= 8 else Np   # block never exceeds array
    tm = max(tm, 1)

    grid = (pl.cdiv(Np, tm),)
    need = resident_bytes + 2 * tm * (stream_row_bytes + out_row_bytes) + (2 << 20)
    vmem_limit = int(min(vmem_cap, max(need, 32 << 20)))

    # Free, contiguous packing reshapes (no HBM copies).
    hpl_p = h_pl.reshape(Np, P)
    hmi_p = h_mi.reshape(Np, P)
    b_arr = jnp.asarray(bias, jnp.float32).reshape(1, 1)
    w = jnp.asarray(weight, jnp.float32)

    row_spec = pl.BlockSpec((tm, P), lambda i: (i, 0))
    out_spec = pl.BlockSpec((tm, 2 * r), lambda i: (i, 0))
    smem_spec = pl.BlockSpec(memory_space=pltpu.MemorySpace.SMEM)
    cparams = pltpu.CompilerParams(dimension_semantics=("parallel",),
                                   vmem_limit_bytes=vmem_limit)

    if per_row:
        c_p = c2.reshape(Np, P)
        wbig = jnp.kron(eye_r, w.T)                                   # (P, P)
        sseg = jnp.kron(eye_r, jnp.ones((n_h, 1), jnp.float32))       # (P, r)
        out = pl.pallas_call(
            _disc_perrow_kernel,
            out_shape=jax.ShapeDtypeStruct((Np, 2 * r), jnp.float32),
            grid_spec=pltpu.PrefetchScalarGridSpec(
                num_scalar_prefetch=0,
                grid=grid,
                in_specs=[row_spec,                                   # h_pl tile
                          row_spec,                                   # h_mi tile
                          pl.BlockSpec((tm, P), lambda i: (i, 0)),    # c tile
                          pl.BlockSpec((P, P), lambda i: (0, 0)),     # W block-diag
                          pl.BlockSpec((P, r), lambda i: (0, 0)),     # selector
                          smem_spec],                                 # bias
                out_specs=out_spec),
            compiler_params=cparams,
        )(hpl_p, hmi_p, c_p, wbig, sseg, b_arr)
    else:
        v = jnp.dot(c2, w.T, preferred_element_type=jnp.float32)      # (1, n_h)
        vmat = jnp.kron(eye_r, v.reshape(n_h, 1)).astype(dtype_h)     # (P, r)
        out = pl.pallas_call(
            _disc_shared_kernel,
            out_shape=jax.ShapeDtypeStruct((Np, 2 * r), jnp.float32),
            grid_spec=pltpu.PrefetchScalarGridSpec(
                num_scalar_prefetch=0,
                grid=grid,
                in_specs=[row_spec,                                   # h_pl tile
                          row_spec,                                   # h_mi tile
                          pl.BlockSpec((P, r), lambda i: (0, 0)),     # Vmat (resident)
                          smem_spec],                                 # bias
                out_specs=out_spec),
            compiler_params=cparams,
        )(hpl_p, hmi_p, vmat, b_arr)

    # (Np, 2r) -> (N, 2): packed row p, slot j holds logical row p*r + j.
    logits = jnp.transpose(out.reshape(Np, 2, r), (0, 2, 1)).reshape(N, 2)

    # Optional sample biases (same as the += in torch).
    if s_bias1 is not None:
        logits = logits.at[:, 0:1].add(s_bias1)
    if s_bias2 is not None:
        logits = logits.at[:, 1:2].add(s_bias2)
    return logits


def _reference(c, h_pl, h_mi, weight, bias):
    c_x = jnp.broadcast_to(jnp.asarray(c).reshape(-1, h_pl.shape[1]),
                           h_pl.shape).astype(jnp.float32)
    w = jnp.asarray(weight, jnp.float32)
    sc1 = jnp.sum((h_pl.astype(jnp.float32) @ w) * c_x, -1, keepdims=True) + bias
    sc2 = jnp.sum((h_mi.astype(jnp.float32) @ w) * c_x, -1, keepdims=True) + bias
    return jnp.concatenate([sc1, sc2], axis=1)


if __name__ == "__main__":
    n_h = 32          # hidden dim of the Bilinear layer
    N = 48            # number of nodes (multiple of 128 // n_h -> packed path)

    key = jax.random.PRNGKey(0)
    k_c, k_pl, k_mi, k_w = jax.random.split(key, 4)

    c = jax.random.normal(k_c, (1, n_h), jnp.float32)        # summary vector
    h_pl = jax.random.normal(k_pl, (N, n_h), jnp.float32)    # positive samples
    h_mi = jax.random.normal(k_mi, (N, n_h), jnp.float32)    # negative samples

    # Deterministic xavier_uniform_ for nn.Bilinear(n_h, n_h, 1).weight of
    # shape (1, n_h, n_h): fan_in = n_h*n_h, fan_out = n_h.
    bound = (6.0 / (n_h * n_h + n_h)) ** 0.5
    weight = jax.random.uniform(k_w, (n_h, n_h), jnp.float32,
                                minval=-bound, maxval=bound)
    bias = jnp.float32(0.0)                                   # bias.data.fill_(0.0)

    ref = _reference(c, h_pl, h_mi, weight, bias)

    # 1) Shared summary vector (the DGI use-case): packed MXU-matvec path (r=4).
    logits = jax.block_until_ready(discriminator_forward(c, h_pl, h_mi, weight, bias))
    assert logits.shape == (N, 2)
    assert jnp.allclose(logits, ref, atol=1e-4, rtol=1e-4), (
        f"mismatch (shared c): {jnp.max(jnp.abs(logits - ref))}")

    # 2) Per-row summary (c already expanded): fused c @ W.T on the MXU.
    c_full = jnp.broadcast_to(c, h_pl.shape)
    logits2 = jax.block_until_ready(discriminator_forward(c_full, h_pl, h_mi, weight, bias))
    assert jnp.allclose(logits2, ref, atol=1e-4, rtol=1e-4), (
        f"mismatch (per-row c): {jnp.max(jnp.abs(logits2 - ref))}")

    # 3) Unpacked fallback (N not divisible by 128 // n_h) exercises r = 1 and
    #    the masked ragged last tile.
    N3 = 17
    h_pl3, h_mi3 = h_pl[:N3], h_mi[:N3]
    ref3 = _reference(c, h_pl3, h_mi3, weight, bias)
    logits3 = jax.block_until_ready(discriminator_forward(c, h_pl3, h_mi3, weight, bias))
    assert jnp.allclose(logits3, ref3, atol=1e-4, rtol=1e-4), (
        f"mismatch (r=1 fallback): {jnp.max(jnp.abs(logits3 - ref3))}")

    print("KERNEL_OK")
</pallas_src>

<mosaic_0001>
module attributes {stable_mosaic.version = 11 : i64} {
  func.func @_disc_shared_kernel(%arg0: i32, %arg1: memref<8x128xf32, #tpu.memory_space<vmem>>, %arg2: memref<8x128xf32, #tpu.memory_space<vmem>>, %arg3: memref<128x4xf32, #tpu.memory_space<vmem>>, %arg4: memref<1x1xf32, #tpu.memory_space<smem>>, %arg5: memref<8x8xf32, #tpu.memory_space<vmem>>) attributes {dimension_semantics = [#tpu.dimension_semantics<parallel>], iteration_bounds = array<i64: 2>, scalar_prefetch = 0 : i64, scratch_operands = 0 : i64, tpu.core_type = #tpu.core_type<tc>, window_params = [{transform_indices = @transform_0, window_bounds = array<i64: 8, 128>}, {transform_indices = @transform_1, window_bounds = array<i64: 8, 128>}, {pipeline_mode = #tpu.pipeline_mode<synchronous>, transform_indices = @transform_2, window_bounds = array<i64: 128, 4>}, {transform_indices = @transform_3, window_bounds = array<i64: 1, 1>}, {transform_indices = @transform_4, window_bounds = array<i64: 8, 8>}]} {
    %c0 = arith.constant 0 : index
    %c0_0 = arith.constant 0 : index
    %0 = vector.load %arg3[%c0, %c0_0] : memref<128x4xf32, #tpu.memory_space<vmem>>, vector<128x4xf32>
    %c0_1 = arith.constant 0 : index
    %c0_2 = arith.constant 0 : index
    %1 = memref.load %arg4[%c0_1, %c0_2] : memref<1x1xf32, #tpu.memory_space<smem>>
    %c0_3 = arith.constant 0 : index
    %c0_4 = arith.constant 0 : index
    %2 = vector.load %arg1[%c0_3, %c0_4] : memref<8x128xf32, #tpu.memory_space<vmem>>, vector<8x128xf32>
    %cst = arith.constant dense<0.000000e+00> : vector<8x4xf32>
    %3 = tpu.matmul %2, %0, %cst {dimension_numbers = #tpu.dot_dimension_numbers<[1], [0], [0], [1], [0, 0, 1, 1], [], []>} : vector<8x128xf32>, vector<128x4xf32>, vector<8x4xf32> -> vector<8x4xf32>
    %c0_5 = arith.constant 0 : index
    %c0_6 = arith.constant 0 : index
    %4 = vector.load %arg2[%c0_5, %c0_6] : memref<8x128xf32, #tpu.memory_space<vmem>>, vector<8x128xf32>
    %cst_7 = arith.constant dense<0.000000e+00> : vector<8x4xf32>
    %5 = tpu.matmul %4, %0, %cst_7 {dimension_numbers = #tpu.dot_dimension_numbers<[1], [0], [0], [1], [0, 0, 1, 1], [], []>} : vector<8x128xf32>, vector<128x4xf32>, vector<8x4xf32> -> vector<8x4xf32>
    %6 = tpu.concatenate %3, %5 in 1 : vector<8x4xf32>, vector<8x4xf32> -> vector<8x8xf32>
    %7 = vector.broadcast %1 : f32 to vector<8x8xf32>
    %8 = arith.addf %6, %7 : vector<8x8xf32>
    %c0_8 = arith.constant 0 : index
    %c0_9 = arith.constant 0 : index
    %9 = vector.load %arg5[%c0_8, %c0_9] : memref<8x8xf32, #tpu.memory_space<vmem>>, vector<8x8xf32>
    tpu.vector_store %arg5[%c0_8, %c0_9], %8 {strides = array<i32>} : memref<8x8xf32, #tpu.memory_space<vmem>>, vector<8x8xf32>,
    return
  }
  func.func @transform_0(%arg0: i32) -> (i32, i32) {
    %c0_i32 = arith.constant 0 : i32
    %c0_i32_0 = arith.constant 0 : i32
    return %arg0, %c0_i32 : i32, i32
  }
  func.func @transform_1(%arg0: i32) -> (i32, i32) {
    %c0_i32 = arith.constant 0 : i32
    %c0_i32_0 = arith.constant 0 : i32
    return %arg0, %c0_i32 : i32, i32
  }
  func.func @transform_2(%arg0: i32) -> (i32, i32) {
    %c0_i32 = arith.constant 0 : i32
    %c0_i32_0 = arith.constant 0 : i32
    %c0_i32_1 = arith.constant 0 : i32
    return %c0_i32, %c0_i32_0 : i32, i32
  }
  func.func @transform_3(%arg0: i32) -> (i32, i32) {
    %c0_i32 = arith.constant 0 : i32
    %c0_i32_0 = arith.constant 0 : i32
    %c0_i32_1 = arith.constant 0 : i32
    return %c0_i32, %c0_i32_0 : i32, i32
  }
  func.func @transform_4(%arg0: i32) -> (i32, i32) {
    %c0_i32 = arith.constant 0 : i32
    %c0_i32_0 = arith.constant 0 : i32
    return %arg0, %c0_i32 : i32, i32
  }
}

</mosaic_0001>

<llo_original>
// kernel: discriminator_forward.1
$region0: #{discriminator_forward.1}
  #allocation0 [shape = 'u32[]', space=smem, size = 0x4, offset = 0x4, fixed_abs, tag = 'smem constant byte address 0x4 - core index']
  #allocation1 [shape = 'u32[144,128]{1,0:T(1,128)}', space=vmem, size = 0x12000, scoped, tag = 'internal scratch']
  #allocation2 [shape = 'f32[1,1]{1,0:T(1,128)S(6)}', space=smem, size = 0x200, scoped, tag = 'scoped memory for discriminator_forward.1']
  %s0 = inlined_call_operand.vmem [shape: f32[12,128], index: 0, kind: input, shape index: {}]
  %s1 = inlined_call_operand.vmem [shape: f32[12,128], index: 1, kind: input, shape index: {}]
  %s2 = inlined_call_operand.vmem [shape: f32[128,4], index: 2, kind: input, shape index: {}]
  %s3 = inlined_call_operand.<no memory space> [shape: f32[1,1], index: 3, kind: input, shape index: {}]
  %s4 = inlined_call_operand.vmem [shape: f32[12,8], index: 4, kind: output, shape index: {}]
  %s5 = sld [smem:[#allocation0]]
  $region49: #{discriminator_forward.1} parent=0
    _
  %s7 = ssub.s32 1, %s5
  %s8 = scalar_select 0, %s7, %s5
  %9 = sst [smem:[#allocation2]] %s3
  loop: start=0, step=1, limit=4
  $region2: #{discriminator_forward.1} parent=0 // loop_pre_header
    _
  $region3: #{discriminator_forward.1} parent=0 // loop_header
    %s11 = sphi 0, %s15
    %p12 = scmp.ge.s32.totalorder %s11, 4
    %s21 = sphi 0, %s23
    %s24 = sphi 0, %s21
    %s25 = sphi 0, %s24
    %s41 = sphi 0, %s25
    %s47 = sphi 0, %s49
    %s50 = sphi 0, %s47
    %s51 = sphi 0, %s50
    %s67 = sphi 0, %s51
    %s71 = sphi 0, %s71
    %s73 = sphi 0, %s71
    %s74 = sphi 0, %s73
    %s88 = sphi 0, %s74
    %s92 = sphi 0, %s92
    %s94 = sphi 0, %s92
    %s95 = sphi 0, %s94
    %s109 = sphi 0, %s95
    %s115 = sphi 0, %s117
    %s118 = sphi 0, %s115
    %s119 = sphi 0, %s118
    %s135 = sphi 0, %s119
  $region4: #{discriminator_forward.1} parent=0 // loop_header_branch
    %14 = sbr.rel (%p12) target = $region8
  $region5: #{discriminator_forward.1} parent=0 // loop_body
    %s16 = ssub.s32 %s11, 1
    %s17 = ssub.s32 %s11, 2
    %s18 = sadd.s32 %s11, 1
    %s19 = ssub.s32 %s11, %s18
    %p20 = scmp.eq.s32.totalorder %s19, 0
    %s22 = sadd.s32 %s21, 1
    %s23 = scalar_select %p20, %s21, %s22
    %p26 = pneg %p20
    %p27 = scmp.eq.s32.totalorder %s11, 1
    %p28 = por %p26, %p27
    %p29 = scmp.ne.s32.totalorder %s21, %s24
    %p30 = scmp.eq.s32.totalorder %s11, 0
    %p31 = por %p29, %p30
    %p32 = scmp.ne.s32.totalorder %s21, %s24
    %p33 = scmp.eq.s32.totalorder %s16, 1
    %p34 = por %p32, %p33
    %p35 = scmp.ne.s32.totalorder %s24, %s25
    %p36 = scmp.eq.s32.totalorder %s16, 0
    %p37 = por %p35, %p36
    %p38 = scmp.ne.s32.totalorder %s24, %s25
    %p39 = scmp.eq.s32.totalorder %s17, 1
    %p40 = por %p38, %p39
    %p42 = scmp.ne.s32.totalorder %s25, %s41
    %p43 = scmp.eq.s32.totalorder %s17, 0
    %p44 = por %p42, %p43
    %s45 = ssub.s32 %s11, %s18
    %p46 = scmp.eq.s32.totalorder %s45, 0
    %s48 = sadd.s32 %s47, 1
    %s49 = scalar_select %p46, %s47, %s48
    %p52 = pneg %p46
    %p53 = scmp.eq.s32.totalorder %s11, 1
    %p54 = por %p52, %p53
    %p55 = scmp.ne.s32.totalorder %s47, %s50
    %p56 = scmp.eq.s32.totalorder %s11, 0
    %p57 = por %p55, %p56
    %p58 = scmp.ne.s32.totalorder %s47, %s50
    %p59 = scmp.eq.s32.totalorder %s16, 1
    %p60 = por %p58, %p59
    %p61 = scmp.ne.s32.totalorder %s50, %s51
    %p62 = scmp.eq.s32.totalorder %s16, 0
    %p63 = por %p61, %p62
    %p64 = scmp.ne.s32.totalorder %s50, %s51
    %p65 = scmp.eq.s32.totalorder %s17, 1
    %p66 = por %p64, %p65
    %p68 = scmp.ne.s32.totalorder %s51, %s67
    %p69 = scmp.eq.s32.totalorder %s17, 0
    %p70 = por %p68, %p69
    %s72 = sadd.s32 %s71, 1
    %p75 = scmp.eq.s32.totalorder %s11, 1
    %p76 = scmp.ne.s32.totalorder %s71, %s73
    %p77 = scmp.eq.s32.totalorder %s11, 0
    %p78 = por %p76, %p77
    %p79 = scmp.ne.s32.totalorder %s71, %s73
    %p80 = scmp.eq.s32.totalorder %s16, 1
    %p81 = por %p79, %p80
    %p82 = scmp.ne.s32.totalorder %s73, %s74
    %p83 = scmp.eq.s32.totalorder %s16, 0
    %p84 = por %p82, %p83
    %p85 = scmp.ne.s32.totalorder %s73, %s74
    %p86 = scmp.eq.s32.totalorder %s17, 1
    %p87 = por %p85, %p86
    %p89 = scmp.ne.s32.totalorder %s74, %s88
    %p90 = scmp.eq.s32.totalorder %s17, 0
    %p91 = por %p89, %p90
    %s93 = sadd.s32 %s92, 1
    %p96 = scmp.eq.s32.totalorder %s11, 1
    %p97 = scmp.ne.s32.totalorder %s92, %s94
    %p98 = scmp.eq.s32.totalorder %s11, 0
    %p99 = por %p97, %p98
    %p100 = scmp.ne.s32.totalorder %s92, %s94
    %p101 = scmp.eq.s32.totalorder %s16, 1
    %p102 = por %p100, %p101
    %p103 = scmp.ne.s32.totalorder %s94, %s95
    %p104 = scmp.eq.s32.totalorder %s16, 0
    %p105 = por %p103, %p104
    %p106 = scmp.ne.s32.totalorder %s94, %s95
    %p107 = scmp.eq.s32.totalorder %s17, 1
    %p108 = por %p106, %p107
    %p110 = scmp.ne.s32.totalorder %s95, %s109
    %p111 = scmp.eq.s32.totalorder %s17, 0
    %p112 = por %p110, %p111
    %s113 = ssub.s32 %s11, %s18
    %p114 = scmp.eq.s32.totalorder %s113, 0
    %s116 = sadd.s32 %s115, 1
    %s117 = scalar_select %p114, %s115, %s116
    %p120 = pneg %p114
    %p121 = scmp.eq.s32.totalorder %s11, 1
    %p122 = por %p120, %p121
    %p123 = scmp.ne.s32.totalorder %s115, %s118
    %p124 = scmp.eq.s32.totalorder %s11, 0
    %p125 = por %p123, %p124
    %p126 = scmp.ne.s32.totalorder %s115, %s118
    %p127 = scmp.eq.s32.totalorder %s16, 1
    %p128 = por %p126, %p127
    %p129 = scmp.ne.s32.totalorder %s118, %s119
    %p130 = scmp.eq.s32.totalorder %s16, 0
    %p131 = por %p129, %p130
    %p132 = scmp.ne.s32.totalorder %s118, %s119
    %p133 = scmp.eq.s32.totalorder %s17, 1
    %p134 = por %p132, %p133
    %p136 = scmp.ne.s32.totalorder %s119, %s135
    %p137 = scmp.eq.s32.totalorder %s17, 0
    %p138 = por %p136, %p137
    %p139 = scmp.le.s32.totalorder 1, %s11
    %p140 = scmp.lt.s32.totalorder %s11, 3
    %p141 = pnand %p139, %p140
    %p142 = pneg %p141
    // Predicated region
    $region9: #{discriminator_forward.1} parent=5 // pred_check
      _
    $region10: #{discriminator_forward.1} parent=5 // pred_check_branch
      %144 = sbr.rel (%p141) target = $region12
    $region11: #{discriminator_forward.1} parent=5 // pred_region
      %s145 = ssub.s32 %s11, 1
      // Predicated region
      $region13: #{discriminator_forward.1} parent=11 // pred_check
        %p146 = pneg %p84
      $region14: #{discriminator_forward.1} parent=11 // pred_check_branch
        %148 = sbr.rel (%p146) target = $region16
      $region15: #{discriminator_forward.1} parent=11 // pred_region
        _
      $region16: #{discriminator_forward.1} parent=11 // pred_fallthru
        _
      // Predicated region
      $region17: #{discriminator_forward.1} parent=11 // pred_check
        %p149 = pneg %p105
      $region18: #{discriminator_forward.1} parent=11 // pred_check_branch
        %151 = sbr.rel (%p149) target = $region20
      $region19: #{discriminator_forward.1} parent=11 // pred_region
        _
      $region20: #{discriminator_forward.1} parent=11 // pred_fallthru
        _
    $region12: #{discriminator_forward.1} parent=5 // pred_fallthru
      _
    %p152 = scmp.lt.s32.totalorder %s11, 2
    // Predicated region
    $region21: #{discriminator_forward.1} parent=5 // pred_check
      %p153 = pneg %p152
    $region22: #{discriminator_forward.1} parent=5 // pred_check_branch
      %155 = sbr.rel (%p153) target = $region24
    $region23: #{discriminator_forward.1} parent=5 // pred_region
      // Predicated region
      $region25: #{discriminator_forward.1} parent=23 // pred_check
        %p156 = pneg %p31
      $region26: #{discriminator_forward.1} parent=23 // pred_check_branch
        %158 = sbr.rel (%p156) target = $region28
      $region27: #{discriminator_forward.1} parent=23 // pred_region
        %p159 = scmp.lt.s32.totalorder %s11, 1
        %s160 = scalar_select %p159, %s11, 1
        %s161 = smul.addr %s160, 8
        %s162 = scalar_lea.vmem %s0, %s161
      $region28: #{discriminator_forward.1} parent=23 // pred_fallthru
        _
      // Predicated region
      $region29: #{discriminator_forward.1} parent=23 // pred_check
        %p163 = pneg %p57
      $region30: #{discriminator_forward.1} parent=23 // pred_check_branch
        %165 = sbr.rel (%p163) target = $region32
      $region31: #{discriminator_forward.1} parent=23 // pred_region
        %p166 = scmp.lt.s32.totalorder %s11, 1
        %s167 = scalar_select %p166, %s11, 1
        %s168 = smul.addr %s167, 8
        %s169 = scalar_lea.vmem %s1, %s168
      $region32: #{discriminator_forward.1} parent=23 // pred_fallthru
        _
    $region24: #{discriminator_forward.1} parent=5 // pred_fallthru
      _
    %p170 = scmp.le.s32.totalorder 1, %s11
    %p171 = scmp.lt.s32.totalorder %s11, 3
    %p172 = pnand %p170, %p171
    %p173 = pneg %p172
    // Predicated region
    $region33: #{discriminator_forward.1} parent=5 // pred_check
      _
    $region34: #{discriminator_forward.1} parent=5 // pred_check_branch
      %175 = sbr.rel (%p172) target = $region36
    $region35: #{discriminator_forward.1} parent=5 // pred_region
      %s176 = ssub.s32 %s11, 1
      %p177 = scmp.lt.s32.totalorder %s16, 1
      %s178 = scalar_select %p177, %s16, 1
      %s179 = smul.addr %s178, 8
      %s180 = scalar_lea.vmem %s0, %s179
      %p181 = pneg %p37
      %p182 = pneg %p34
      %p183 = scmp.lt.s32.totalorder %s16, 1
      %s184 = scalar_select %p183, %s16, 1
      %s185 = smul.addr %s184, 8
      %s186 = scalar_lea.vmem %s1, %s185
      %p187 = pneg %p63
      %p188 = pneg %p60
      %p189 = pneg %p84
      %p190 = pneg %p81
      %p191 = pneg %p105
      %p192 = pneg %p102
      %p193 = pneg %p131
      %p194 = pneg %p128
      %p195 = scmp.lt.s32.totalorder %s16, 1
      %s196 = scalar_select %p195, %s16, 1
      %s197 = smul.addr %s196, 8
      %s198 = scalar_lea.vmem %s4, %s197
      %p199 = scmp.lt.s32.totalorder %s16, 1
      %s200 = scalar_select %p199, %s16, 1
      %s201 = smul.addr %s200, 8
      %s202 = scalar_lea.vmem %s0, %s201
      %p203 = scmp.lt.s32.totalorder %s16, 1
      %s204 = scalar_select %p203, %s16, 1
      %s205 = smul.addr %s204, 8
      %s206 = scalar_lea.vmem %s1, %s205
      %p207 = scmp.lt.s32.totalorder %s16, 1
      %s208 = scalar_select %p207, %s16, 1
      %s209 = smul.addr %s208, 8
      %s210 = scalar_lea.vmem %s4, %s209
      %v211 = vld [vmem:[%s2] sm:$0xff]
      %v212 = vld [vmem:[%s2 + $0x8] sm:$0xff]
      %v213 = vld [vmem:[%s2 + $0x10] sm:$0xff]
      %v214 = vld [vmem:[%s2 + $0x18] sm:$0xff]
      %v215 = vld [vmem:[%s2 + $0x20] sm:$0xff]
      %v216 = vld [vmem:[%s2 + $0x28] sm:$0xff]
      %v217 = vld [vmem:[%s2 + $0x30] sm:$0xff]
      %v218 = vld [vmem:[%s2 + $0x38] sm:$0xff]
      %v219 = vld [vmem:[%s2 + $0x40] sm:$0xff]
      %v220 = vld [vmem:[%s2 + $0x48] sm:$0xff]
      %v221 = vld [vmem:[%s2 + $0x50] sm:$0xff]
      %v222 = vld [vmem:[%s2 + $0x58] sm:$0xff]
      %v223 = vld [vmem:[%s2 + $0x60] sm:$0xff]
      %v224 = vld [vmem:[%s2 + $0x68] sm:$0xff]
      %v225 = vld [vmem:[%s2 + $0x70] sm:$0xff]
      %v226 = vld [vmem:[%s2 + $0x78] sm:$0xff]
      %s227 = sld [smem:[#allocation2]]
      %v228 = vld [vmem:[%s202] sm:$0xff]
      %229 = vmatprep.subr.mxu0 0.0
      %230 = vmatpush1.msra.mxu0 %v226
      %231 = vmatprep.subr.mxu0 0.0
      %232 = vmatpush1.msra.mxu0 %v225
      %233 = vmatprep.subr.mxu0 0.0
      %234 = vmatpush1.msra.mxu0 %v224
      %235 = vmatprep.subr.mxu0 0.0
      %236 = vmatpush1.msra.mxu0 %v223
      %237 = vmatprep.subr.mxu0 0.0
      %238 = vmatpush1.msra.mxu0 %v222
      %239 = vmatprep.subr.mxu0 0.0
      %240 = vmatpush1.msra.mxu0 %v221
      %241 = vmatprep.subr.mxu0 0.0
      %242 = vmatpush1.msra.mxu0 %v220
      %243 = vmatprep.subr.mxu0 0.0
      %244 = vmatpush1.msra.mxu0 %v219
      %245 = vmatprep.subr.mxu0 0.0
      %246 = vmatpush1.msra.mxu0 %v218
      %247 = vmatprep.subr.mxu0 0.0
      %248 = vmatpush1.msra.mxu0 %v217
      %249 = vmatprep.subr.mxu0 0.0
      %250 = vmatpush1.msra.mxu0 %v216
      %251 = vmatprep.subr.mxu0 0.0
      %252 = vmatpush1.msra.mxu0 %v215
      %253 = vmatprep.subr.mxu0 0.0
      %254 = vmatpush1.msra.mxu0 %v214
      %255 = vmatprep.subr.mxu0 0.0
      %256 = vmatpush1.msra.mxu0 %v213
      %257 = vmatprep.subr.mxu0 0.0
      %258 = vmatpush1.msra.mxu0 %v212
      %259 = vmatprep.subr.mxu0 0.0
      %260 = vmatpush1.msra.mxu0 %v211
      %261 = vmatprep.subr.mxu0 0.0
      %262 = vmatpush2.msra.mxu0 0.0
      %263 = vmatprep.subr.mxu0 0.0
      %264 = vmatpush2.msra.mxu0 0.0
      %265 = vmatprep.subr.mxu0 0.0
      %266 = vmatpush2.msra.mxu0 0.0
      %267 = vmatprep.subr.mxu0 0.0
      %268 = vmatpush2.msra.mxu0 0.0
      %269 = vmatprep.subr.mxu0 0.0
      %270 = vmatpush2.msra.mxu0 0.0
      %271 = vmatprep.subr.mxu0 0.0
      %272 = vmatpush2.msra.mxu0 0.0
      %273 = vmatprep.subr.mxu0 0.0
      %274 = vmatpush2.msra.mxu0 0.0
      %275 = vmatprep.subr.mxu0 0.0
      %276 = vmatpush2.msra.mxu0 0.0
      %277 = vmatprep.subr.mxu0 0.0
      %278 = vmatpush2.msra.mxu0 0.0
      %279 = vmatprep.subr.mxu0 0.0
      %280 = vmatpush2.msra.mxu0 0.0
      %281 = vmatprep.subr.mxu0 0.0
      %282 = vmatpush2.msra.mxu0 0.0
      %283 = vmatprep.subr.mxu0 0.0
      %284 = vmatpush2.msra.mxu0 0.0
      %285 = vmatprep.subr.mxu0 0.0
      %286 = vmatpush2.msra.mxu0 0.0
      %287 = vmatprep.subr.mxu0 0.0
      %288 = vmatpush2.msra.mxu0 0.0
      %289 = vmatprep.subr.mxu0 0.0
      %290 = vmatpush2.msra.mxu0 0.0
      %291 = vmatprep.subr.mxu0 0.0
      %292 = vmatpush2.msra.mxu0 0.0
      %293 = vmatprep.mubr.f32.mxu0 0.0
      %294 = vmatmul.mubr.f32.gmra.mxu0 %v228
      %v295 = vpop.f32.mrf.mxu0
      %v296 = vadd.f32 0.0, %v295
      %v297 = vpop.f32.mrf.mxu0
      %298 = vdwg.mxu0
      %v299 = vld [vmem:[%s206] sm:$0xff]
      %300 = vmatprep.subr.mxu0 0.0
      %301 = vmatpush1.msra.mxu0 %v226
      %302 = vmatprep.subr.mxu0 0.0
      %303 = vmatpush1.msra.mxu0 %v225
      %304 = vmatprep.subr.mxu0 0.0
      %305 = vmatpush1.msra.mxu0 %v224
      %306 = vmatprep.subr.mxu0 0.0
      %307 = vmatpush1.msra.mxu0 %v223
      %308 = vmatprep.subr.mxu0 0.0
      %309 = vmatpush1.msra.mxu0 %v222
      %310 = vmatprep.subr.mxu0 0.0
      %311 = vmatpush1.msra.mxu0 %v221
      %312 = vmatprep.subr.mxu0 0.0
      %313 = vmatpush1.msra.mxu0 %v220
      %314 = vmatprep.subr.mxu0 0.0
      %315 = vmatpush1.msra.mxu0 %v219
      %316 = vmatprep.subr.mxu0 0.0
      %317 = vmatpush1.msra.mxu0 %v218
      %318 = vmatprep.subr.mxu0 0.0
      %319 = vmatpush1.msra.mxu0 %v217
      %320 = vmatprep.subr.mxu0 0.0
      %321 = vmatpush1.msra.mxu0 %v216
      %322 = vmatprep.subr.mxu0 0.0
      %323 = vmatpush1.msra.mxu0 %v215
      %324 = vmatprep.subr.mxu0 0.0
      %325 = vmatpush1.msra.mxu0 %v214
      %326 = vmatprep.subr.mxu0 0.0
      %327 = vmatpush1.msra.mxu0 %v213
      %328 = vmatprep.subr.mxu0 0.0
      %329 = vmatpush1.msra.mxu0 %v212
      %330 = vmatprep.subr.mxu0 0.0
      %331 = vmatpush1.msra.mxu0 %v211
      %332 = vmatprep.subr.mxu0 0.0
      %333 = vmatpush2.msra.mxu0 0.0
      %334 = vmatprep.subr.mxu0 0.0
      %335 = vmatpush2.msra.mxu0 0.0
      %336 = vmatprep.subr.mxu0 0.0
      %337 = vmatpush2.msra.mxu0 0.0
      %338 = vmatprep.subr.mxu0 0.0
      %339 = vmatpush2.msra.mxu0 0.0
      %340 = vmatprep.subr.mxu0 0.0
      %341 = vmatpush2.msra.mxu0 0.0
      %342 = vmatprep.subr.mxu0 0.0
      %343 = vmatpush2.msra.mxu0 0.0
      %344 = vmatprep.subr.mxu0 0.0
      %345 = vmatpush2.msra.mxu0 0.0
      %346 = vmatprep.subr.mxu0 0.0
      %347 = vmatpush2.msra.mxu0 0.0
      %348 = vmatprep.subr.mxu0 0.0
      %349 = vmatpush2.msra.mxu0 0.0
      %350 = vmatprep.subr.mxu0 0.0
      %351 = vmatpush2.msra.mxu0 0.0
      %352 = vmatprep.subr.mxu0 0.0
      %353 = vmatpush2.msra.mxu0 0.0
      %354 = vmatprep.subr.mxu0 0.0
      %355 = vmatpush2.msra.mxu0 0.0
      %356 = vmatprep.subr.mxu0 0.0
      %357 = vmatpush2.msra.mxu0 0.0
      %358 = vmatprep.subr.mxu0 0.0
      %359 = vmatpush2.msra.mxu0 0.0
      %360 = vmatprep.subr.mxu0 0.0
      %361 = vmatpush2.msra.mxu0 0.0
      %362 = vmatprep.subr.mxu0 0.0
      %363 = vmatpush2.msra.mxu0 0.0
      %364 = vmatprep.mubr.f32.mxu0 0.0
      %365 = vmatmul.mubr.f32.gmra.mxu0 %v299
      %v366 = vpop.f32.mrf.mxu0
      %v367 = vadd.f32 0.0, %v366
      %v368 = vpop.f32.mrf.mxu0
      %369 = vdwg.mxu0
      %371 = vrot.lane.b32.xlu0 %v367, 4
      %v372 = vpop.permute.xlu0 %371
      %vm374 = vcmask 31744
      %v375 = vsel %vm374, %v296, %v372
      %v376 = vstv %s227
      %v377 = vadd.f32 %v375, %v376
      %vm378 = vcmask 64512
      %379 = vst.msk [vmem:[%s210] sm:$0xff] %vm378, %v377
      %p380 = scmp.lt.s32.totalorder %s16, 1
      %s381 = scalar_select %p380, %s16, 1
      %s382 = smul.addr %s381, 8
      %s383 = scalar_lea.vmem %s4, %s382
      // Predicated region
      $region37: #{discriminator_forward.1} parent=35 // pred_check
        %p384 = pneg %p128
      $region38: #{discriminator_forward.1} parent=35 // pred_check_branch
        %386 = sbr.rel (%p384) target = $region40
      $region39: #{discriminator_forward.1} parent=35 // pred_region
        _
      $region40: #{discriminator_forward.1} parent=35 // pred_fallthru
        _
    $region36: #{discriminator_forward.1} parent=5 // pred_fallthru
      _
    %p387 = scmp.le.s32.totalorder 2, %s11
    // Predicated region
    $region41: #{discriminator_forward.1} parent=5 // pred_check
      %p388 = pneg %p387
    $region42: #{discriminator_forward.1} parent=5 // pred_check_branch
      %390 = sbr.rel (%p388) target = $region44
    $region43: #{discriminator_forward.1} parent=5 // pred_region
      %s391 = ssub.s32 %s11, 2
      // Predicated region
      $region45: #{discriminator_forward.1} parent=43 // pred_check
        %p392 = pneg %p134
      $region46: #{discriminator_forward.1} parent=43 // pred_check_branch
        %394 = sbr.rel (%p392) target = $region48
      $region47: #{discriminator_forward.1} parent=43 // pred_region
        %p395 = scmp.lt.s32.totalorder %s17, 1
        %s396 = scalar_select %p395, %s17, 1
        %s397 = smul.addr %s396, 8
        %s398 = scalar_lea.vmem %s4, %s397
      $region48: #{discriminator_forward.1} parent=43 // pred_fallthru
        _
    $region44: #{discriminator_forward.1} parent=5 // pred_fallthru
      _
  $region6: #{discriminator_forward.1} parent=0 // loop_footer
    %s15 = sadd.s32 1, %s11
  $region7: #{discriminator_forward.1} parent=0 // loop_footer_branch
    %10 = sbr.rel target = $region3
  $region8: #{discriminator_forward.1} parent=0 // loop_exit
    _

</llo_original>
